<compile_context>
chip_gen: v6e
topology: v6e:2x2x1
jax: 0.10.0
libtpu: 0.0.40
codegen_flags: <defaults>
</compile_context>

<pallas_src>
import jax
import jax.numpy as jnp
from jax.experimental import pallas as pl
from jax.experimental.pallas import tpu as pltpu

LANE = 128  # vreg lane width


def _qnetwork_kernel(state_ref, action_ref,
                     ws14_ref, wa14_ref, b14_ref,
                     w25_ref, b25_ref,
                     w36_ref, b36_ref,
                     q_ref):
    """Fused two-head critic forward for one batch tile.

    h = relu(state @ Ws + action @ Wa + b14)   # (TB, H2P)  concat-free layer 1
    g = relu(h @ W25_blockdiag + b25)          # (TB, H2P)  both heads, one dot
    q = g @ W36_pad + b36_pad                  # (TB, 128)  in-VMEM temporary
    store q[:, :2]                             # (TB, 2)    only useful lanes hit HBM
    """
    h = (jnp.dot(state_ref[...], ws14_ref[...], preferred_element_type=jnp.float32)
         + jnp.dot(action_ref[...], wa14_ref[...], preferred_element_type=jnp.float32)
         + b14_ref[...])
    h = jnp.maximum(h, 0.0)

    g = jnp.dot(h, w25_ref[...], preferred_element_type=jnp.float32) + b25_ref[...]
    g = jnp.maximum(g, 0.0)

    q = jnp.dot(g, w36_ref[...], preferred_element_type=jnp.float32) + b36_ref[...]
    # Narrow store: only the two real Q columns go back to HBM.
    q_ref[...] = q[:, :2].astype(q_ref.dtype)


def _choose_batch_tile(B, max_tile):
    """Pick the batch tile TB.

    * TB == B for tiny batches (single full-batch tile).
    * Otherwise TB is a multiple of 8 (block-shape constraint), at most
      `max_tile`, and sized ~B/2 when that fits so the grid has >= 2 steps and
      both v7x TensorCores are used under dimension_semantics=("parallel",).
    """
    if B < 16:
        return B
    half = -(-B // 2)            # cdiv(B, 2)  -> at least 2 grid steps
    half = -(-half // 8) * 8     # round up to a multiple of 8
    return min(max_tile, half)


def qnetwork_forward(state, action, fused, *, batch_tile=4096):
    """Pallas-backed QNetwork.forward(state, action) -> (q1, q2)."""
    B, Ds = state.shape
    Da = action.shape[1]
    H2P = fused["b14"].shape[1]  # lane-padded 2*hidden_dim (multiple of 128)

    TB = _choose_batch_tile(B, batch_tile)
    grid = (pl.cdiv(B, TB),)

    # Cost hint reflects the narrow (B, 2) output, not the padded slab.
    flops = 2 * B * ((Ds + Da) * H2P + H2P * H2P + H2P * LANE)
    bytes_accessed = 4 * (B * (Ds + Da + 2)
                          + (Ds + Da) * H2P + H2P * H2P + H2P * LANE
                          + 2 * H2P + LANE)

    # Double-buffered IO tiles + double-buffered resident weights, with headroom.
    # (At large hidden_dim, single-buffer the weights via pipeline_mode=pl.Buffered(1)
    #  and split the block-diagonal W25 into two (H,H) dots instead.)
    weight_bytes = 4 * ((Ds + Da) * H2P + H2P * H2P + H2P * LANE + 2 * H2P + LANE)
    io_bytes = 4 * (TB * (Ds + Da) + TB * 2)
    vmem_limit = int(min(max(2 * (weight_bytes + io_bytes) + (8 << 20), 32 << 20),
                         64 << 20))

    def weight_spec(shape):
        # Constant index_map -> weight block stays VMEM-resident across batch tiles.
        return pl.BlockSpec(shape, lambda i: (0, 0))

    q = pl.pallas_call(
        _qnetwork_kernel,
        out_shape=jax.ShapeDtypeStruct((B, 2), jnp.float32),
        grid=grid,
        in_specs=[
            pl.BlockSpec((TB, Ds), lambda i: (i, 0)),   # state tile
            pl.BlockSpec((TB, Da), lambda i: (i, 0)),   # action tile
            weight_spec((Ds, H2P)),                     # Ws14
            weight_spec((Da, H2P)),                     # Wa14
            weight_spec((1, H2P)),                      # b14
            weight_spec((H2P, H2P)),                    # W25 (block-diagonal)
            weight_spec((1, H2P)),                      # b25
            weight_spec((H2P, LANE)),                   # W36 (zero-padded slab)
            weight_spec((1, LANE)),                     # b36 (zero-padded)
        ],
        out_specs=pl.BlockSpec((TB, 2), lambda i: (i, 0)),
        compiler_params=pltpu.CompilerParams(
            # batch axis is embarrassingly parallel -> splits across v7x's 2 TCs
            dimension_semantics=("parallel",),
            vmem_limit_bytes=vmem_limit),
        cost_estimate=pl.CostEstimate(flops=flops, transcendentals=0,
                                      bytes_accessed=bytes_accessed),
    )(state, action,
      fused["ws14"], fused["wa14"], fused["b14"],
      fused["w25"], fused["b25"],
      fused["w36"], fused["b36"])

    return q[:, 0:1], q[:, 1:2]


def init_qnetwork_params(key, num_inputs, num_actions, hidden_dim):
    """Per-layer Xavier-uniform weights (gain=1), zero biases.

    Weights are stored as (in_features, out_features) so y = x @ W + b, matching
    PyTorch's x @ W.T + b with W initialized Xavier-uniform (symmetric in layout).
    """
    in_dim = num_inputs + num_actions

    def xavier(key, fan_in, fan_out):
        limit = jnp.sqrt(6.0 / (fan_in + fan_out))
        return jax.random.uniform(key, (fan_in, fan_out), jnp.float32,
                                  minval=-limit, maxval=limit)

    keys = jax.random.split(key, 6)
    return {
        "w1": xavier(keys[0], in_dim, hidden_dim), "b1": jnp.zeros((1, hidden_dim), jnp.float32),
        "w2": xavier(keys[1], hidden_dim, hidden_dim), "b2": jnp.zeros((1, hidden_dim), jnp.float32),
        "w3": xavier(keys[2], hidden_dim, 1), "b3": jnp.zeros((1, 1), jnp.float32),
        "w4": xavier(keys[3], in_dim, hidden_dim), "b4": jnp.zeros((1, hidden_dim), jnp.float32),
        "w5": xavier(keys[4], hidden_dim, hidden_dim), "b5": jnp.zeros((1, hidden_dim), jnp.float32),
        "w6": xavier(keys[5], hidden_dim, 1), "b6": jnp.zeros((1, 1), jnp.float32),
    }


def fuse_qnetwork_params(p, num_inputs, hidden_dim, lane=LANE,
                         weight_dtype=jnp.float32):
    """One-time prep: fuse the two heads into wide, lane-padded weights.

    The fused hidden width 2H is zero-padded to H2P = next multiple of 128 so all
    in-kernel vector ops are lane-dense.  Zero padding is exact: padded h/g
    columns are relu(0)=0 and padded W36 rows are zero, so q1/q2 are unchanged.

    Kept in f32 for bit-level parity with the PyTorch module; on v6e/v7x pass
    weight_dtype=jnp.bfloat16 for 2x MXU rate and half the weight DMA/VMEM
    (re-validate the 1e-4 tolerance if you do).
    """
    H = hidden_dim
    H2 = 2 * H
    H2P = -(-H2 // lane) * lane

    in_dim = p["w1"].shape[0]
    w14 = jnp.concatenate([p["w1"], p["w4"]], axis=1)            # (in_dim, 2H)
    ws14 = jnp.zeros((num_inputs, H2P), jnp.float32).at[:, :H2].set(w14[:num_inputs])
    wa14 = jnp.zeros((in_dim - num_inputs, H2P), jnp.float32).at[:, :H2].set(w14[num_inputs:])
    b14 = jnp.zeros((1, H2P), jnp.float32).at[:, :H2].set(
        jnp.concatenate([p["b1"], p["b4"]], axis=1))

    w25 = jnp.zeros((H2P, H2P), jnp.float32)
    w25 = w25.at[:H, :H].set(p["w2"]).at[H:H2, H:H2].set(p["w5"])  # block-diag
    b25 = jnp.zeros((1, H2P), jnp.float32).at[:, :H2].set(
        jnp.concatenate([p["b2"], p["b5"]], axis=1))

    w36 = jnp.zeros((H2P, lane), jnp.float32)
    w36 = w36.at[:H, 0].set(p["w3"][:, 0]).at[H:H2, 1].set(p["w6"][:, 0])
    b36 = jnp.zeros((1, lane), jnp.float32)
    b36 = b36.at[0, 0].set(p["b3"][0, 0]).at[0, 1].set(p["b6"][0, 0])

    cast = lambda a: a.astype(weight_dtype)
    return {"ws14": cast(ws14), "wa14": cast(wa14), "b14": b14,
            "w25": cast(w25), "b25": b25, "w36": cast(w36), "b36": b36}


def _reference_forward(state, action, p):
    """Pure-JAX reference (mirrors the PyTorch module) for correctness check."""
    xu = jnp.concatenate([state, action], axis=1)
    h1 = jax.nn.relu(xu @ p["w1"] + p["b1"])
    h1 = jax.nn.relu(h1 @ p["w2"] + p["b2"])
    q1 = h1 @ p["w3"] + p["b3"]
    h2 = jax.nn.relu(xu @ p["w4"] + p["b4"])
    h2 = jax.nn.relu(h2 @ p["w5"] + p["b5"])
    q2 = h2 @ p["w6"] + p["b6"]
    return q1, q2


if __name__ == "__main__":
    # Small shapes implied by the module: state dim, action dim, hidden dim.
    num_inputs, num_actions, hidden_dim = 8, 4, 32

    key = jax.random.PRNGKey(0)
    k_params, k_data = jax.random.split(key)

    params = init_qnetwork_params(k_params, num_inputs, num_actions, hidden_dim)
    fused = fuse_qnetwork_params(params, num_inputs, hidden_dim)

    # batch=2 exercises the single full-batch tile; batch=100 exercises a
    # multi-step grid (both TCs on v7x) with a partial final tile.
    for batch in (2, 100):
        k_state, k_action = jax.random.split(jax.random.fold_in(k_data, batch))
        state = jax.random.normal(k_state, (batch, num_inputs), jnp.float32)
        action = jax.random.normal(k_action, (batch, num_actions), jnp.float32)

        q1, q2 = qnetwork_forward(state, action, fused)
        jax.block_until_ready((q1, q2))

        q1_ref, q2_ref = _reference_forward(state, action, params)
        assert q1.shape == (batch, 1) and q2.shape == (batch, 1)
        assert jnp.allclose(q1, q1_ref, atol=1e-4), "q1 mismatch vs reference"
        assert jnp.allclose(q2, q2_ref, atol=1e-4), "q2 mismatch vs reference"

    # TODO(synk): QNetwork.penultimate_layer is not ported (only forward is).
    print("KERNEL_OK")
</pallas_src>

<mosaic_0001>
module attributes {stable_mosaic.version = 11 : i64} {
  func.func @_qnetwork_kernel(%arg0: i32, %arg1: memref<2x8xf32, #tpu.memory_space<vmem>>, %arg2: memref<2x4xf32, #tpu.memory_space<vmem>>, %arg3: memref<8x128xf32, #tpu.memory_space<vmem>>, %arg4: memref<4x128xf32, #tpu.memory_space<vmem>>, %arg5: memref<1x128xf32, #tpu.memory_space<vmem>>, %arg6: memref<128x128xf32, #tpu.memory_space<vmem>>, %arg7: memref<1x128xf32, #tpu.memory_space<vmem>>, %arg8: memref<128x128xf32, #tpu.memory_space<vmem>>, %arg9: memref<1x128xf32, #tpu.memory_space<vmem>>, %arg10: memref<2x2xf32, #tpu.memory_space<vmem>>) attributes {dimension_semantics = [#tpu.dimension_semantics<parallel>], iteration_bounds = array<i64: 1>, scalar_prefetch = 0 : i64, scratch_operands = 0 : i64, tpu.core_type = #tpu.core_type<tc>, window_params = [{transform_indices = @transform_0, window_bounds = array<i64: 2, 8>}, {transform_indices = @transform_1, window_bounds = array<i64: 2, 4>}, {pipeline_mode = #tpu.pipeline_mode<synchronous>, transform_indices = @transform_2, window_bounds = array<i64: 8, 128>}, {pipeline_mode = #tpu.pipeline_mode<synchronous>, transform_indices = @transform_3, window_bounds = array<i64: 4, 128>}, {pipeline_mode = #tpu.pipeline_mode<synchronous>, transform_indices = @transform_4, window_bounds = array<i64: 1, 128>}, {pipeline_mode = #tpu.pipeline_mode<synchronous>, transform_indices = @transform_5, window_bounds = array<i64: 128, 128>}, {pipeline_mode = #tpu.pipeline_mode<synchronous>, transform_indices = @transform_6, window_bounds = array<i64: 1, 128>}, {pipeline_mode = #tpu.pipeline_mode<synchronous>, transform_indices = @transform_7, window_bounds = array<i64: 128, 128>}, {pipeline_mode = #tpu.pipeline_mode<synchronous>, transform_indices = @transform_8, window_bounds = array<i64: 1, 128>}, {transform_indices = @transform_9, window_bounds = array<i64: 2, 2>}]} {
    %c0 = arith.constant 0 : index
    %c0_0 = arith.constant 0 : index
    %0 = vector.load %arg1[%c0, %c0_0] : memref<2x8xf32, #tpu.memory_space<vmem>>, vector<2x8xf32>
    %c0_1 = arith.constant 0 : index
    %c0_2 = arith.constant 0 : index
    %1 = vector.load %arg3[%c0_1, %c0_2] : memref<8x128xf32, #tpu.memory_space<vmem>>, vector<8x128xf32>
    %cst = arith.constant dense<0.000000e+00> : vector<2x128xf32>
    %2 = tpu.matmul %0, %1, %cst {dimension_numbers = #tpu.dot_dimension_numbers<[1], [0], [0], [1], [0, 0, 1, 1], [], []>} : vector<2x8xf32>, vector<8x128xf32>, vector<2x128xf32> -> vector<2x128xf32>
    %c0_3 = arith.constant 0 : index
    %c0_4 = arith.constant 0 : index
    %3 = vector.load %arg2[%c0_3, %c0_4] : memref<2x4xf32, #tpu.memory_space<vmem>>, vector<2x4xf32>
    %c0_5 = arith.constant 0 : index
    %c0_6 = arith.constant 0 : index
    %4 = vector.load %arg4[%c0_5, %c0_6] : memref<4x128xf32, #tpu.memory_space<vmem>>, vector<4x128xf32>
    %cst_7 = arith.constant dense<0.000000e+00> : vector<2x128xf32>
    %5 = tpu.matmul %3, %4, %cst_7 {dimension_numbers = #tpu.dot_dimension_numbers<[1], [0], [0], [1], [0, 0, 1, 1], [], []>} : vector<2x4xf32>, vector<4x128xf32>, vector<2x128xf32> -> vector<2x128xf32>
    %6 = arith.addf %2, %5 : vector<2x128xf32>
    %c0_8 = arith.constant 0 : index
    %c0_9 = arith.constant 0 : index
    %7 = vector.load %arg5[%c0_8, %c0_9] : memref<1x128xf32, #tpu.memory_space<vmem>>, vector<1x128xf32>
    %8 = vector.broadcast %7 : vector<1x128xf32> to vector<2x128xf32>
    %9 = arith.addf %6, %8 : vector<2x128xf32>
    %cst_10 = arith.constant 0.000000e+00 : f32
    %10 = vector.broadcast %cst_10 : f32 to vector<2x128xf32>
    %11 = arith.maximumf %9, %10 : vector<2x128xf32>
    %c0_11 = arith.constant 0 : index
    %c0_12 = arith.constant 0 : index
    %12 = vector.load %arg6[%c0_11, %c0_12] : memref<128x128xf32, #tpu.memory_space<vmem>>, vector<128x128xf32>
    %cst_13 = arith.constant dense<0.000000e+00> : vector<2x128xf32>
    %13 = tpu.matmul %11, %12, %cst_13 {dimension_numbers = #tpu.dot_dimension_numbers<[1], [0], [0], [1], [0, 0, 1, 1], [], []>} : vector<2x128xf32>, vector<128x128xf32>, vector<2x128xf32> -> vector<2x128xf32>
    %c0_14 = arith.constant 0 : index
    %c0_15 = arith.constant 0 : index
    %14 = vector.load %arg7[%c0_14, %c0_15] : memref<1x128xf32, #tpu.memory_space<vmem>>, vector<1x128xf32>
    %15 = vector.broadcast %14 : vector<1x128xf32> to vector<2x128xf32>
    %16 = arith.addf %13, %15 : vector<2x128xf32>
    %cst_16 = arith.constant 0.000000e+00 : f32
    %17 = vector.broadcast %cst_16 : f32 to vector<2x128xf32>
    %18 = arith.maximumf %16, %17 : vector<2x128xf32>
    %c0_17 = arith.constant 0 : index
    %c0_18 = arith.constant 0 : index
    %19 = vector.load %arg8[%c0_17, %c0_18] : memref<128x128xf32, #tpu.memory_space<vmem>>, vector<128x128xf32>
    %cst_19 = arith.constant dense<0.000000e+00> : vector<2x128xf32>
    %20 = tpu.matmul %18, %19, %cst_19 {dimension_numbers = #tpu.dot_dimension_numbers<[1], [0], [0], [1], [0, 0, 1, 1], [], []>} : vector<2x128xf32>, vector<128x128xf32>, vector<2x128xf32> -> vector<2x128xf32>
    %c0_20 = arith.constant 0 : index
    %c0_21 = arith.constant 0 : index
    %21 = vector.load %arg9[%c0_20, %c0_21] : memref<1x128xf32, #tpu.memory_space<vmem>>, vector<1x128xf32>
    %22 = vector.broadcast %21 : vector<1x128xf32> to vector<2x128xf32>
    %23 = arith.addf %20, %22 : vector<2x128xf32>
    %24 = vector.extract_strided_slice %23 {offsets = [0, 0], sizes = [2, 2], strides = [1, 1]} : vector<2x128xf32> to vector<2x2xf32>
    %c0_22 = arith.constant 0 : index
    %c0_23 = arith.constant 0 : index
    %25 = vector.load %arg10[%c0_22, %c0_23] : memref<2x2xf32, #tpu.memory_space<vmem>>, vector<2x2xf32>
    tpu.vector_store %arg10[%c0_22, %c0_23], %24 {strides = array<i32>} : memref<2x2xf32, #tpu.memory_space<vmem>>, vector<2x2xf32>,
    return
  }
  func.func @transform_0(%arg0: i32) -> (i32, i32) {
    %c0_i32 = arith.constant 0 : i32
    %c0_i32_0 = arith.constant 0 : i32
    return %arg0, %c0_i32 : i32, i32
  }
  func.func @transform_1(%arg0: i32) -> (i32, i32) {
    %c0_i32 = arith.constant 0 : i32
    %c0_i32_0 = arith.constant 0 : i32
    return %arg0, %c0_i32 : i32, i32
  }
  func.func @transform_2(%arg0: i32) -> (i32, i32) {
    %c0_i32 = arith.constant 0 : i32
    %c0_i32_0 = arith.constant 0 : i32
    %c0_i32_1 = arith.constant 0 : i32
    return %c0_i32, %c0_i32_0 : i32, i32
  }
  func.func @transform_3(%arg0: i32) -> (i32, i32) {
    %c0_i32 = arith.constant 0 : i32
    %c0_i32_0 = arith.constant 0 : i32
    %c0_i32_1 = arith.constant 0 : i32
    return %c0_i32, %c0_i32_0 : i32, i32
  }
  func.func @transform_4(%arg0: i32) -> (i32, i32) {
    %c0_i32 = arith.constant 0 : i32
    %c0_i32_0 = arith.constant 0 : i32
    %c0_i32_1 = arith.constant 0 : i32
    return %c0_i32, %c0_i32_0 : i32, i32
  }
  func.func @transform_5(%arg0: i32) -> (i32, i32) {
    %c0_i32 = arith.constant 0 : i32
    %c0_i32_0 = arith.constant 0 : i32
    %c0_i32_1 = arith.constant 0 : i32
    return %c0_i32, %c0_i32_0 : i32, i32
  }
  func.func @transform_6(%arg0: i32) -> (i32, i32) {
    %c0_i32 = arith.constant 0 : i32
    %c0_i32_0 = arith.constant 0 : i32
    %c0_i32_1 = arith.constant 0 : i32
    return %c0_i32, %c0_i32_0 : i32, i32
  }
  func.func @transform_7(%arg0: i32) -> (i32, i32) {
    %c0_i32 = arith.constant 0 : i32
    %c0_i32_0 = arith.constant 0 : i32
    %c0_i32_1 = arith.constant 0 : i32
    return %c0_i32, %c0_i32_0 : i32, i32
  }
  func.func @transform_8(%arg0: i32) -> (i32, i32) {
    %c0_i32 = arith.constant 0 : i32
    %c0_i32_0 = arith.constant 0 : i32
    %c0_i32_1 = arith.constant 0 : i32
    return %c0_i32, %c0_i32_0 : i32, i32
  }
  func.func @transform_9(%arg0: i32) -> (i32, i32) {
    %c0_i32 = arith.constant 0 : i32
    %c0_i32_0 = arith.constant 0 : i32
    return %arg0, %c0_i32 : i32, i32
  }
}

</mosaic_0001>

<llo_original>
// kernel: tpu_custom_call.1
$region0: #{tpu_custom_call.1}
  #allocation0 [shape = 'u32[]', space=smem, size = 0x4, offset = 0x4, fixed_abs, tag = 'smem constant byte address 0x4 - core index']
  #allocation1 [shape = 'u32[144,128]{1,0:T(1,128)}', space=vmem, size = 0x12000, scoped, tag = 'internal scratch']
  %s0 = inlined_call_operand.hbm [shape: f32[2,8], index: 0, kind: input, shape index: {}]
  %s1 = inlined_call_operand.hbm [shape: f32[2,4], index: 1, kind: input, shape index: {}]
  %s2 = inlined_call_operand.hbm [shape: f32[8,128], index: 2, kind: input, shape index: {}]
  %s3 = inlined_call_operand.vmem [shape: f32[4,128], index: 3, kind: input, shape index: {}]
  %s4 = inlined_call_operand.vmem [shape: f32[1,128], index: 4, kind: input, shape index: {}]
  %s5 = inlined_call_operand.hbm [shape: f32[128,128], index: 5, kind: input, shape index: {}]
  %s6 = inlined_call_operand.vmem [shape: f32[1,128], index: 6, kind: input, shape index: {}]
  %s7 = inlined_call_operand.hbm [shape: f32[128,128], index: 7, kind: input, shape index: {}]
  %s8 = inlined_call_operand.vmem [shape: f32[1,128], index: 8, kind: input, shape index: {}]
  %s9 = inlined_call_operand.hbm [shape: f32[2,2], index: 9, kind: output, shape index: {}]
  %s10 = sld [smem:[#allocation0]]
  $region66: #{tpu_custom_call.1} parent=0
    _
  %s12 = ssub.s32 1, %s10
  %s13 = scalar_select 0, %s12, %s10
  $region1: #{tpu_custom_call.1} parent=0
    #allocation2 [shape = 'u8[1024]{0}', space=vmem, size = 0x400, scoped, tag = 'input window, operand 0, single buffered']
    #allocation3 [shape = 's32[1]{0}', space=sflag, size = 0x4, scoped, tag = 'scoped memory for tpu_custom_call.1']
    #allocation4 [shape = 's32[1]{0}', space=sflag, size = 0x4, scoped, tag = 'scoped memory for tpu_custom_call.1']
    #allocation5 [shape = 'u8[1024]{0}', space=vmem, size = 0x400, scoped, tag = 'input window, operand 1, single buffered']
    #allocation6 [shape = 's32[1]{0}', space=sflag, size = 0x4, scoped, tag = 'scoped memory for tpu_custom_call.1']
    #allocation7 [shape = 'u8[4096]{0}', space=vmem, size = 0x1000, scoped, tag = 'input window, operand 2, single buffered']
    #allocation8 [shape = 'u8[65536]{0}', space=vmem, size = 0x10000, scoped, tag = 'input window, operand 5, single buffered']
    #allocation9 [shape = 's32[1]{0}', space=sflag, size = 0x4, scoped, tag = 'scoped memory for tpu_custom_call.1']
    #allocation10 [shape = 'u8[65536]{0}', space=vmem, size = 0x10000, scoped, tag = 'input window, operand 7, single buffered']
    #allocation11 [shape = 'u8[1024]{0}', space=vmem, size = 0x400, scoped, tag = 'output window, operand 0, single buffered']
    %14 = vsyncpa [#allocation3], 0
    %15 = vsyncpa [#allocation6], 0
    %16 = vsyncpa [#allocation9], 0
    %17 = vsyncpa [#allocation4], 0
    // Predicated region
    $region2: #{tpu_custom_call.1} parent=1 // pred_check
      _
    $region3: #{tpu_custom_call.1} parent=1 // pred_check_branch
      %19 = sbr.rel (0) target = $region5
    $region4: #{tpu_custom_call.1} parent=1 // pred_region
      %s21 = ssub.s32 32, 32
      %22 = vsyncadd [#allocation3], %s21
      %s24 = sshll.u32 [#allocation2], 4
      %s25 = int_to_ptr.vmem [resolvable:$true] %s24
      %27 = dma.hbm_to_vmem [thread:$0]  %s0, 32, %s25, [#allocation3]
    $region5: #{tpu_custom_call.1} parent=1 // pred_fallthru
      _
    // Predicated region
    $region6: #{tpu_custom_call.1} parent=1 // pred_check
      _
    $region7: #{tpu_custom_call.1} parent=1 // pred_check_branch
      %29 = sbr.rel (0) target = $region9
    $region8: #{tpu_custom_call.1} parent=1 // pred_region
      %s31 = ssub.s32 32, 32
      %32 = vsyncadd [#allocation6], %s31
      %s34 = sshll.u32 [#allocation5], 4
      %s35 = int_to_ptr.vmem [resolvable:$true] %s34
      %37 = dma.hbm_to_vmem [thread:$0]  %s1, 32, %s35, [#allocation6]
    $region9: #{tpu_custom_call.1} parent=1 // pred_fallthru
      _
    // Predicated region
    $region10: #{tpu_custom_call.1} parent=1 // pred_check
      _
    $region11: #{tpu_custom_call.1} parent=1 // pred_check_branch
      %39 = sbr.rel (0) target = $region13
    $region12: #{tpu_custom_call.1} parent=1 // pred_region
      %s41 = ssub.s32 128, 128
      %42 = vsyncadd [#allocation6], %s41
      %s44 = sshll.u32 [#allocation7], 4
      %s45 = int_to_ptr.vmem [resolvable:$true] %s44
      %47 = dma.hbm_to_vmem [thread:$0]  %s2, 128, %s45, [#allocation6]
    $region13: #{tpu_custom_call.1} parent=1 // pred_fallthru
      _
    // Predicated region
    $region14: #{tpu_custom_call.1} parent=1 // pred_check
      _
    $region15: #{tpu_custom_call.1} parent=1 // pred_check_branch
      %49 = sbr.rel (0) target = $region17
    $region16: #{tpu_custom_call.1} parent=1 // pred_region
      _
    $region17: #{tpu_custom_call.1} parent=1 // pred_fallthru
      _
    // Predicated region
    $region18: #{tpu_custom_call.1} parent=1 // pred_check
      _
    $region19: #{tpu_custom_call.1} parent=1 // pred_check_branch
      %51 = sbr.rel (0) target = $region21
    $region20: #{tpu_custom_call.1} parent=1 // pred_region
      _
    $region21: #{tpu_custom_call.1} parent=1 // pred_fallthru
      _
    // Predicated region
    $region22: #{tpu_custom_call.1} parent=1 // pred_check
      _
    $region23: #{tpu_custom_call.1} parent=1 // pred_check_branch
      %53 = sbr.rel (0) target = $region25
    $region24: #{tpu_custom_call.1} parent=1 // pred_region
      %s55 = ssub.s32 2048, 2048
      %56 = vsyncadd [#allocation9], %s55
      %s57 = sshll.u32 [#allocation8], 4
      %s58 = int_to_ptr.vmem [resolvable:$true] %s57
      %63 = dma.hbm_to_vmem [thread:$0]  %s5, 2048, %s58, [#allocation9], 128, 128, 8
    $region25: #{tpu_custom_call.1} parent=1 // pred_fallthru
      _
    // Predicated region
    $region26: #{tpu_custom_call.1} parent=1 // pred_check
      _
    $region27: #{tpu_custom_call.1} parent=1 // pred_check_branch
      %65 = sbr.rel (0) target = $region29
    $region28: #{tpu_custom_call.1} parent=1 // pred_region
      _
    $region29: #{tpu_custom_call.1} parent=1 // pred_fallthru
      _
    // Predicated region
    $region30: #{tpu_custom_call.1} parent=1 // pred_check
      _
    $region31: #{tpu_custom_call.1} parent=1 // pred_check_branch
      %67 = sbr.rel (0) target = $region33
    $region32: #{tpu_custom_call.1} parent=1 // pred_region
      %s69 = ssub.s32 2048, 2048
      %70 = vsyncadd [#allocation9], %s69
      %s71 = sshll.u32 [#allocation10], 4
      %s72 = int_to_ptr.vmem [resolvable:$true] %s71
      %77 = dma.hbm_to_vmem [thread:$0]  %s7, 2048, %s72, [#allocation9], 128, 128, 8
    $region33: #{tpu_custom_call.1} parent=1 // pred_fallthru
      _
    // Predicated region
    $region34: #{tpu_custom_call.1} parent=1 // pred_check
      _
    $region35: #{tpu_custom_call.1} parent=1 // pred_check_branch
      %79 = sbr.rel (0) target = $region37
    $region36: #{tpu_custom_call.1} parent=1 // pred_region
      _
    $region37: #{tpu_custom_call.1} parent=1 // pred_fallthru
      _
    // Predicated region
    $region38: #{tpu_custom_call.1} parent=1 // pred_check
      _
    $region39: #{tpu_custom_call.1} parent=1 // pred_check_branch
      %81 = sbr.rel (0) target = $region41
    $region40: #{tpu_custom_call.1} parent=1 // pred_region
      %82 = dma.done [#allocation3], 32
    $region41: #{tpu_custom_call.1} parent=1 // pred_fallthru
      _
    // Predicated region
    $region42: #{tpu_custom_call.1} parent=1 // pred_check
      _
    $region43: #{tpu_custom_call.1} parent=1 // pred_check_branch
      %84 = sbr.rel (0) target = $region45
    $region44: #{tpu_custom_call.1} parent=1 // pred_region
      %85 = dma.done [#allocation6], 32
    $region45: #{tpu_custom_call.1} parent=1 // pred_fallthru
      _
    // Predicated region
    $region46: #{tpu_custom_call.1} parent=1 // pred_check
      _
    $region47: #{tpu_custom_call.1} parent=1 // pred_check_branch
      %87 = sbr.rel (0) target = $region49
    $region48: #{tpu_custom_call.1} parent=1 // pred_region
      %88 = dma.done [#allocation6], 128
    $region49: #{tpu_custom_call.1} parent=1 // pred_fallthru
      _
    // Predicated region
    $region50: #{tpu_custom_call.1} parent=1 // pred_check
      _
    $region51: #{tpu_custom_call.1} parent=1 // pred_check_branch
      %90 = sbr.rel (0) target = $region53
    $region52: #{tpu_custom_call.1} parent=1 // pred_region
      %91 = dma.done [#allocation9], 2048
    $region53: #{tpu_custom_call.1} parent=1 // pred_fallthru
      _
    // Predicated region
    $region54: #{tpu_custom_call.1} parent=1 // pred_check
      _
    $region55: #{tpu_custom_call.1} parent=1 // pred_check_branch
      %93 = sbr.rel (0) target = $region57
    $region56: #{tpu_custom_call.1} parent=1 // pred_region
      %94 = dma.done [#allocation9], 2048
    $region57: #{tpu_custom_call.1} parent=1 // pred_fallthru
      _
    %v95 = vld [vmem:[#allocation2] sm:$0x3]
    %v96 = vld [vmem:[#allocation7] sm:$0xff]
    %v97 = vld [vmem:[#allocation5] sm:$0x3]
    %v98 = vld [vmem:[%s3] sm:$0xf]
    %vm99 = vcmask 31744
    %v101 = vsel %vm99, %v97, 0
    %vm103 = vcmask 1043456
    %v105 = vsel %vm103, %v98, 0
    %107 = vmatprep.subr.mxu0 0.0
    %108 = vmatpush1.msra.mxu0 0.0
    %109 = vmatprep.subr.mxu0 0.0
    %110 = vmatpush1.msra.mxu0 0.0
    %111 = vmatprep.subr.mxu0 0.0
    %112 = vmatpush1.msra.mxu0 0.0
    %113 = vmatprep.subr.mxu0 0.0
    %114 = vmatpush1.msra.mxu0 0.0
    %115 = vmatprep.subr.mxu0 0.0
    %116 = vmatpush1.msra.mxu0 0.0
    %117 = vmatprep.subr.mxu0 0.0
    %118 = vmatpush1.msra.mxu0 0.0
    %119 = vmatprep.subr.mxu0 0.0
    %120 = vmatpush1.msra.mxu0 0.0
    %121 = vmatprep.subr.mxu0 0.0
    %122 = vmatpush1.msra.mxu0 0.0
    %123 = vmatprep.subr.mxu0 0.0
    %124 = vmatpush1.msra.mxu0 0.0
    %125 = vmatprep.subr.mxu0 0.0
    %126 = vmatpush1.msra.mxu0 0.0
    %127 = vmatprep.subr.mxu0 0.0
    %128 = vmatpush1.msra.mxu0 0.0
    %129 = vmatprep.subr.mxu0 0.0
    %130 = vmatpush1.msra.mxu0 0.0
    %131 = vmatprep.subr.mxu0 0.0
    %132 = vmatpush1.msra.mxu0 0.0
    %133 = vmatprep.subr.mxu0 0.0
    %134 = vmatpush1.msra.mxu0 0.0
    %135 = vmatprep.subr.mxu0 0.0
    %136 = vmatpush1.msra.mxu0 0.0
    %137 = vmatprep.subr.mxu0 0.0
    %138 = vmatpush1.msra.mxu0 %v105
    %139 = vmatprep.subr.mxu0 0.0
    %140 = vmatpush2.msra.mxu0 0.0
    %141 = vmatprep.subr.mxu0 0.0
    %142 = vmatpush2.msra.mxu0 0.0
    %143 = vmatprep.subr.mxu0 0.0
    %144 = vmatpush2.msra.mxu0 0.0
    %145 = vmatprep.subr.mxu0 0.0
    %146 = vmatpush2.msra.mxu0 0.0
    %147 = vmatprep.subr.mxu0 0.0
    %148 = vmatpush2.msra.mxu0 0.0
    %149 = vmatprep.subr.mxu0 0.0
    %150 = vmatpush2.msra.mxu0 0.0
    %151 = vmatprep.subr.mxu0 0.0
    %152 = vmatpush2.msra.mxu0 0.0
    %153 = vmatprep.subr.mxu0 0.0
    %154 = vmatpush2.msra.mxu0 0.0
    %155 = vmatprep.subr.mxu0 0.0
    %156 = vmatpush2.msra.mxu0 0.0
    %157 = vmatprep.subr.mxu0 0.0
    %158 = vmatpush2.msra.mxu0 0.0
    %159 = vmatprep.subr.mxu0 0.0
    %160 = vmatpush2.msra.mxu0 0.0
    %161 = vmatprep.subr.mxu0 0.0
    %162 = vmatpush2.msra.mxu0 0.0
    %163 = vmatprep.subr.mxu0 0.0
    %164 = vmatpush2.msra.mxu0 0.0
    %165 = vmatprep.subr.mxu0 0.0
    %166 = vmatpush2.msra.mxu0 0.0
    %167 = vmatprep.subr.mxu0 0.0
    %168 = vmatpush2.msra.mxu0 0.0
    %169 = vmatprep.subr.mxu0 0.0
    %170 = vmatpush2.msra.mxu0 0.0
    %171 = vmatprep.mubr.f32.mxu0 0.0
    %172 = vmatmul.mubr.f32.gmra.mxu0 %v101
    %v173 = vpop.f32.mrf.mxu0
    %v174 = vadd.f32 0.0, %v173
    %v175 = vpop.f32.mrf.mxu0
    %176 = vdwg.mxu0
    %vm177 = vcmask 64512
    %v179 = vsel %vm177, %v95, 0
    %181 = vmatprep.subr.mxu0 0.0
    %182 = vmatpush1.msra.mxu0 0.0
    %183 = vmatprep.subr.mxu0 0.0
    %184 = vmatpush1.msra.mxu0 0.0
    %185 = vmatprep.subr.mxu0 0.0
    %186 = vmatpush1.msra.mxu0 0.0
    %187 = vmatprep.subr.mxu0 0.0
    %188 = vmatpush1.msra.mxu0 0.0
    %189 = vmatprep.subr.mxu0 0.0
    %190 = vmatpush1.msra.mxu0 0.0
    %191 = vmatprep.subr.mxu0 0.0
    %192 = vmatpush1.msra.mxu0 0.0
    %193 = vmatprep.subr.mxu0 0.0
    %194 = vmatpush1.msra.mxu0 0.0
    %195 = vmatprep.subr.mxu0 0.0
    %196 = vmatpush1.msra.mxu0 0.0
    %197 = vmatprep.subr.mxu0 0.0
    %198 = vmatpush1.msra.mxu0 0.0
    %199 = vmatprep.subr.mxu0 0.0
    %200 = vmatpush1.msra.mxu0 0.0
    %201 = vmatprep.subr.mxu0 0.0
    %202 = vmatpush1.msra.mxu0 0.0
    %203 = vmatprep.subr.mxu0 0.0
    %204 = vmatpush1.msra.mxu0 0.0
    %205 = vmatprep.subr.mxu0 0.0
    %206 = vmatpush1.msra.mxu0 0.0
    %207 = vmatprep.subr.mxu0 0.0
    %208 = vmatpush1.msra.mxu0 0.0
    %209 = vmatprep.subr.mxu0 0.0
    %210 = vmatpush1.msra.mxu0 0.0
    %211 = vmatprep.subr.mxu0 0.0
    %212 = vmatpush1.msra.mxu0 %v96
    %213 = vmatprep.subr.mxu0 0.0
    %214 = vmatpush2.msra.mxu0 0.0
    %215 = vmatprep.subr.mxu0 0.0
    %216 = vmatpush2.msra.mxu0 0.0
    %217 = vmatprep.subr.mxu0 0.0
    %218 = vmatpush2.msra.mxu0 0.0
    %219 = vmatprep.subr.mxu0 0.0
    %220 = vmatpush2.msra.mxu0 0.0
    %221 = vmatprep.subr.mxu0 0.0
    %222 = vmatpush2.msra.mxu0 0.0
    %223 = vmatprep.subr.mxu0 0.0
    %224 = vmatpush2.msra.mxu0 0.0
    %225 = vmatprep.subr.mxu0 0.0
    %226 = vmatpush2.msra.mxu0 0.0
    %227 = vmatprep.subr.mxu0 0.0
    %228 = vmatpush2.msra.mxu0 0.0
    %229 = vmatprep.subr.mxu0 0.0
    %230 = vmatpush2.msra.mxu0 0.0
    %231 = vmatprep.subr.mxu0 0.0
    %232 = vmatpush2.msra.mxu0 0.0
    %233 = vmatprep.subr.mxu0 0.0
    %234 = vmatpush2.msra.mxu0 0.0
    %235 = vmatprep.subr.mxu0 0.0
    %236 = vmatpush2.msra.mxu0 0.0
    %237 = vmatprep.subr.mxu0 0.0
    %238 = vmatpush2.msra.mxu0 0.0
    %239 = vmatprep.subr.mxu0 0.0
    %240 = vmatpush2.msra.mxu0 0.0
    %241 = vmatprep.subr.mxu0 0.0
    %242 = vmatpush2.msra.mxu0 0.0
    %243 = vmatprep.subr.mxu0 0.0
    %244 = vmatpush2.msra.mxu0 0.0
    %245 = vmatprep.mubr.f32.mxu0 0.0
    %246 = vmatmul.mubr.f32.gmra.mxu0 %v179
    %v247 = vpop.f32.mrf.mxu0
    %v248 = vadd.f32 %v174, %v247
    %v249 = vpop.f32.mrf.mxu0
    %250 = vdwg.mxu0
    %v251 = vld [vmem:[%s4] sm:$0x1]
    %v253 = vlaneseq
    %v254 = vshrl.u32 %v253, 7
    %v255 = vsub.s32 0, %v254
    %v256 = vrot.slane %v251, %v255
    %v258 = vadd.f32 %v248, %v256
    %v259 = vmax.f32 %v258, 0.0
    %v260 = vld [vmem:[#allocation8] sm:$0xff]
    %v261 = vld [vmem:[#allocation8 + $0x8] sm:$0xff]
    %v262 = vld [vmem:[#allocation8 + $0x10] sm:$0xff]
    %v263 = vld [vmem:[#allocation8 + $0x18] sm:$0xff]
    %v264 = vld [vmem:[#allocation8 + $0x20] sm:$0xff]
    %v265 = vld [vmem:[#allocation8 + $0x28] sm:$0xff]
    %v266 = vld [vmem:[#allocation8 + $0x30] sm:$0xff]
    %v267 = vld [vmem:[#allocation8 + $0x38] sm:$0xff]
    %v268 = vld [vmem:[#allocation8 + $0x40] sm:$0xff]
    %v269 = vld [vmem:[#allocation8 + $0x48] sm:$0xff]
    %v270 = vld [vmem:[#allocation8 + $0x50] sm:$0xff]
    %v271 = vld [vmem:[#allocation8 + $0x58] sm:$0xff]
    %v272 = vld [vmem:[#allocation8 + $0x60] sm:$0xff]
    %v273 = vld [vmem:[#allocation8 + $0x68] sm:$0xff]
    %v274 = vld [vmem:[#allocation8 + $0x70] sm:$0xff]
    %v275 = vld [vmem:[#allocation8 + $0x78] sm:$0xff]
    %v276 = vld [vmem:[%s6] sm:$0x1]
    %v278 = vlaneseq
    %v279 = vshrl.u32 %v278, 7
    %v280 = vsub.s32 0, %v279
    %v281 = vrot.slane %v276, %v280
    %283 = vmatprep.subr.mxu0 0.0
    %284 = vmatpush1.msra.mxu0 %v275
    %285 = vmatprep.subr.mxu0 0.0
    %286 = vmatpush1.msra.mxu0 %v274
    %287 = vmatprep.subr.mxu0 0.0
    %288 = vmatpush1.msra.mxu0 %v273
    %289 = vmatprep.subr.mxu0 0.0
    %290 = vmatpush1.msra.mxu0 %v272
    %291 = vmatprep.subr.mxu0 0.0
    %292 = vmatpush1.msra.mxu0 %v271
    %293 = vmatprep.subr.mxu0 0.0
    %294 = vmatpush1.msra.mxu0 %v270
    %295 = vmatprep.subr.mxu0 0.0
    %296 = vmatpush1.msra.mxu0 %v269
    %297 = vmatprep.subr.mxu0 0.0
    %298 = vmatpush1.msra.mxu0 %v268
    %299 = vmatprep.subr.mxu0 0.0
    %300 = vmatpush1.msra.mxu0 %v267
    %301 = vmatprep.subr.mxu0 0.0
    %302 = vmatpush1.msra.mxu0 %v266
    %303 = vmatprep.subr.mxu0 0.0
    %304 = vmatpush1.msra.mxu0 %v265
    %305 = vmatprep.subr.mxu0 0.0
    %306 = vmatpush1.msra.mxu0 %v264
    %307 = vmatprep.subr.mxu0 0.0
    %308 = vmatpush1.msra.mxu0 %v263
    %309 = vmatprep.subr.mxu0 0.0
    %310 = vmatpush1.msra.mxu0 %v262
    %311 = vmatprep.subr.mxu0 0.0
    %312 = vmatpush1.msra.mxu0 %v261
    %313 = vmatprep.subr.mxu0 0.0
    %314 = vmatpush1.msra.mxu0 %v260
    %315 = vmatprep.subr.mxu0 0.0
    %316 = vmatpush2.msra.mxu0 0.0
    %317 = vmatprep.subr.mxu0 0.0
    %318 = vmatpush2.msra.mxu0 0.0
    %319 = vmatprep.subr.mxu0 0.0
    %320 = vmatpush2.msra.mxu0 0.0
    %321 = vmatprep.subr.mxu0 0.0
    %322 = vmatpush2.msra.mxu0 0.0
    %323 = vmatprep.subr.mxu0 0.0
    %324 = vmatpush2.msra.mxu0 0.0
    %325 = vmatprep.subr.mxu0 0.0
    %326 = vmatpush2.msra.mxu0 0.0
    %327 = vmatprep.subr.mxu0 0.0
    %328 = vmatpush2.msra.mxu0 0.0
    %329 = vmatprep.subr.mxu0 0.0
    %330 = vmatpush2.msra.mxu0 0.0
    %331 = vmatprep.subr.mxu0 0.0
    %332 = vmatpush2.msra.mxu0 0.0
    %333 = vmatprep.subr.mxu0 0.0
    %334 = vmatpush2.msra.mxu0 0.0
    %335 = vmatprep.subr.mxu0 0.0
    %336 = vmatpush2.msra.mxu0 0.0
    %337 = vmatprep.subr.mxu0 0.0
    %338 = vmatpush2.msra.mxu0 0.0
    %339 = vmatprep.subr.mxu0 0.0
    %340 = vmatpush2.msra.mxu0 0.0
    %341 = vmatprep.subr.mxu0 0.0
    %342 = vmatpush2.msra.mxu0 0.0
    %343 = vmatprep.subr.mxu0 0.0
    %344 = vmatpush2.msra.mxu0 0.0
    %345 = vmatprep.subr.mxu0 0.0
    %346 = vmatpush2.msra.mxu0 0.0
    %347 = vmatprep.mubr.f32.mxu0 0.0
    %348 = vmatmul.mubr.f32.gmra.mxu0 %v259
    %v349 = vpop.f32.mrf.mxu0
    %v350 = vadd.f32 %v281, %v349
    %v351 = vpop.f32.mrf.mxu0
    %352 = vdwg.mxu0
    %v353 = vmax.f32 %v350, 0.0
    %v354 = vld [vmem:[#allocation10] sm:$0xff]
    %v355 = vld [vmem:[#allocation10 + $0x8] sm:$0xff]
    %v356 = vld [vmem:[#allocation10 + $0x10] sm:$0xff]
    %v357 = vld [vmem:[#allocation10 + $0x18] sm:$0xff]
    %v358 = vld [vmem:[#allocation10 + $0x20] sm:$0xff]
    %v359 = vld [vmem:[#allocation10 + $0x28] sm:$0xff]
    %v360 = vld [vmem:[#allocation10 + $0x30] sm:$0xff]
    %v361 = vld [vmem:[#allocation10 + $0x38] sm:$0xff]
    %v362 = vld [vmem:[#allocation10 + $0x40] sm:$0xff]
    %v363 = vld [vmem:[#allocation10 + $0x48] sm:$0xff]
    %v364 = vld [vmem:[#allocation10 + $0x50] sm:$0xff]
    %v365 = vld [vmem:[#allocation10 + $0x58] sm:$0xff]
    %v366 = vld [vmem:[#allocation10 + $0x60] sm:$0xff]
    %v367 = vld [vmem:[#allocation10 + $0x68] sm:$0xff]
    %v368 = vld [vmem:[#allocation10 + $0x70] sm:$0xff]
    %v369 = vld [vmem:[#allocation10 + $0x78] sm:$0xff]
    %v370 = vld [vmem:[%s8] sm:$0x1]
    %v372 = vlaneseq
    %v373 = vshrl.u32 %v372, 7
    %v374 = vsub.s32 0, %v373
    %v375 = vrot.slane %v370, %v374
    %377 = vmatprep.subr.mxu0 0.0
    %378 = vmatpush1.msra.mxu0 %v369
    %379 = vmatprep.subr.mxu0 0.0
    %380 = vmatpush1.msra.mxu0 %v368
    %381 = vmatprep.subr.mxu0 0.0
    %382 = vmatpush1.msra.mxu0 %v367
    %383 = vmatprep.subr.mxu0 0.0
    %384 = vmatpush1.msra.mxu0 %v366
    %385 = vmatprep.subr.mxu0 0.0
    %386 = vmatpush1.msra.mxu0 %v365
    %387 = vmatprep.subr.mxu0 0.0
    %388 = vmatpush1.msra.mxu0 %v364
    %389 = vmatprep.subr.mxu0 0.0
    %390 = vmatpush1.msra.mxu0 %v363
    %391 = vmatprep.subr.mxu0 0.0
    %392 = vmatpush1.msra.mxu0 %v362
    %393 = vmatprep.subr.mxu0 0.0
    %394 = vmatpush1.msra.mxu0 %v361
    %395 = vmatprep.subr.mxu0 0.0
    %396 = vmatpush1.msra.mxu0 %v360
    %397 = vmatprep.subr.mxu0 0.0
    %398 = vmatpush1.msra.mxu0 %v359
    %399 = vmatprep.subr.mxu0 0.0
    %400 = vmatpush1.msra.mxu0 %v358
    %401 = vmatprep.subr.mxu0 0.0
    %402 = vmatpush1.msra.mxu0 %v357
    %403 = vmatprep.subr.mxu0 0.0
    %404 = vmatpush1.msra.mxu0 %v356
    %405 = vmatprep.subr.mxu0 0.0
    %406 = vmatpush1.msra.mxu0 %v355
    %407 = vmatprep.subr.mxu0 0.0
    %408 = vmatpush1.msra.mxu0 %v354
    %409 = vmatprep.subr.mxu0 0.0
    %410 = vmatpush2.msra.mxu0 0.0
    %411 = vmatprep.subr.mxu0 0.0
    %412 = vmatpush2.msra.mxu0 0.0
    %413 = vmatprep.subr.mxu0 0.0
    %414 = vmatpush2.msra.mxu0 0.0
    %415 = vmatprep.subr.mxu0 0.0
    %416 = vmatpush2.msra.mxu0 0.0
    %417 = vmatprep.subr.mxu0 0.0
    %418 = vmatpush2.msra.mxu0 0.0
    %419 = vmatprep.subr.mxu0 0.0
    %420 = vmatpush2.msra.mxu0 0.0
    %421 = vmatprep.subr.mxu0 0.0
    %422 = vmatpush2.msra.mxu0 0.0
    %423 = vmatprep.subr.mxu0 0.0
    %424 = vmatpush2.msra.mxu0 0.0
    %425 = vmatprep.subr.mxu0 0.0
    %426 = vmatpush2.msra.mxu0 0.0
    %427 = vmatprep.subr.mxu0 0.0
    %428 = vmatpush2.msra.mxu0 0.0
    %429 = vmatprep.subr.mxu0 0.0
    %430 = vmatpush2.msra.mxu0 0.0
    %431 = vmatprep.subr.mxu0 0.0
    %432 = vmatpush2.msra.mxu0 0.0
    %433 = vmatprep.subr.mxu0 0.0
    %434 = vmatpush2.msra.mxu0 0.0
    %435 = vmatprep.subr.mxu0 0.0
    %436 = vmatpush2.msra.mxu0 0.0
    %437 = vmatprep.subr.mxu0 0.0
    %438 = vmatpush2.msra.mxu0 0.0
    %439 = vmatprep.subr.mxu0 0.0
    %440 = vmatpush2.msra.mxu0 0.0
    %441 = vmatprep.mubr.f32.mxu0 0.0
    %442 = vmatmul.mubr.f32.gmra.mxu0 %v353
    %v443 = vpop.f32.mrf.mxu0
    %v444 = vadd.f32 %v375, %v443
    %v445 = vpop.f32.mrf.mxu0
    %446 = vdwg.mxu0
    %vm447 = vcmask 9216
    %448 = vst.msk [vmem:[#allocation11] sm:$0x3] %vm447, %v444
    // Predicated region
    $region58: #{tpu_custom_call.1} parent=1 // pred_check
      _
    $region59: #{tpu_custom_call.1} parent=1 // pred_check_branch
      %450 = sbr.rel (0) target = $region61
    $region60: #{tpu_custom_call.1} parent=1 // pred_region
      %s452 = ssub.s32 32, 32
      %453 = vsyncadd [#allocation4], %s452
      %s455 = sshll.u32 [#allocation11], 4
      %s456 = int_to_ptr.vmem [resolvable:$true] %s455
      %458 = dma.vmem_to_hbm [thread:$0]  %s456, 32, %s9, [#allocation4]
    $region61: #{tpu_custom_call.1} parent=1 // pred_fallthru
      _
    // Predicated region
    $region62: #{tpu_custom_call.1} parent=1 // pred_check
      _
    $region63: #{tpu_custom_call.1} parent=1 // pred_check_branch
      %460 = sbr.rel (0) target = $region65
    $region64: #{tpu_custom_call.1} parent=1 // pred_region
      %461 = dma.done [#allocation4], 32
    $region65: #{tpu_custom_call.1} parent=1 // pred_fallthru
      _
    %462 = vsyncpa [#allocation3], 1
    %463 = vsyncpa [#allocation6], 1
    %464 = vsyncpa [#allocation9], 1
    %465 = vsyncpa [#allocation4], 1

</llo_original>
